<compile_context>
chip_gen: v5e
topology: v5e:2x2
jax: 0.10.0
libtpu: 0.0.40
codegen_flags: <defaults>
</compile_context>

<pallas_src>
import functools

import jax
import jax.numpy as jnp
from jax.experimental import pallas as pl
from jax.experimental.pallas import tpu as pltpu

LANE = 128
SUBLANE = 8
BF16_PACK = 16  # bf16 sublane packing


def _round_up(x, m):
    return (x + m - 1) // m * m


def _default_num_parallel_steps():
    """2 on v7x (2 TensorCores/chip, 'parallel' grid steps shard across them);
    1 on single-TC v5e/v6e so the whole batch runs in one grid step."""
    try:
        kind = jax.devices()[0].device_kind.lower()
    except Exception:
        return 1
    return 2 if "v7" in kind or "7x" in kind else 1


def actor_fused_kernel(x_ref, w1_ref, b1_ref, w2_ref, b2_ref, wh_ref, bh_ref,
                       lo_ref, hi_ref, out_ref):
    """One batch tile of the actor MLP.

    x_ref   : [TB, S_pad] bf16 state tile (pre-cast / pre-padded in wrapper)
    w*_ref  : bf16 weights [in_pad, out_pad]; b*_ref f32 biases [1, out_pad]
    wh/bh   : fused heads -- columns [0, A) = mean, [A, 2A) = log_std, rest 0
    lo/hi   : [1, P_pad] per-column clamp bounds (+-inf on mean cols, -20/2 on
              log_std + pad cols) -> clamp is two VPU min/max ops, no iota.
    out_ref : [TB, P_pad] f32 (mean | clamped log_std | zero pad)
    """
    # hidden layer 1: Linear + ReLU (bf16 x bf16 MXU, f32 accumulate),
    # epilogue fused: add + relu + bf16 cast in one elementwise pass.
    h1 = jnp.maximum(
        jnp.dot(x_ref[...], w1_ref[...], preferred_element_type=jnp.float32)
        + b1_ref[...], 0.0).astype(jnp.bfloat16)

    # hidden layer 2: Linear + ReLU
    h2 = jnp.maximum(
        jnp.dot(h1, w2_ref[...], preferred_element_type=jnp.float32)
        + b2_ref[...], 0.0).astype(jnp.bfloat16)

    # fused heads: one matmul produces [mean | log_std | pad]
    y = jnp.dot(h2, wh_ref[...], preferred_element_type=jnp.float32) + bh_ref[...]

    # per-column clamp (identity on mean columns, [-20, 2] on log_std columns)
    out_ref[...] = jnp.minimum(jnp.maximum(y, lo_ref[...]),
                               hi_ref[...]).astype(out_ref.dtype)


def init_actor_params(key, state_dim, action_dim, hidden_dim=256):
    """Raw params: weights [in, out] f32 (transposed from torch), biases [1, out]."""
    ks = jax.random.split(key, 8)

    def lin(kw, kb, fan_in, fan_out):
        bound = 1.0 / float(jnp.sqrt(jnp.float32(fan_in)))
        w = jax.random.uniform(kw, (fan_in, fan_out), jnp.float32, -bound, bound)
        b = jax.random.uniform(kb, (1, fan_out), jnp.float32, -bound, bound)
        return w, b

    w1, b1 = lin(ks[0], ks[1], state_dim, hidden_dim)
    w2, b2 = lin(ks[2], ks[3], hidden_dim, hidden_dim)
    wm, bm = lin(ks[4], ks[5], hidden_dim, action_dim)
    wl, bl = lin(ks[6], ks[7], hidden_dim, action_dim)
    return dict(w1=w1, b1=b1, w2=w2, b2=b2, wm=wm, bm=bm, wl=wl, bl=bl)


def pack_actor_params(raw):
    """Pad to TPU-friendly shapes, fuse the two heads, cast weights to bf16.

    The state-feature dim is padded only to a multiple of 16 (bf16 packing),
    NOT to 128 -- the small trailing dim is legal since the kernel block spans
    the full array extent, and it keeps the wrapper-side x pad tiny.
    """
    S, H = raw["w1"].shape
    A = raw["wm"].shape[1]
    S_pad = _round_up(S, BF16_PACK)
    H_pad = _round_up(H, LANE)
    P_pad = _round_up(2 * A, LANE)

    def pad_to(x, shape):
        return jnp.pad(x, [(0, t - s) for s, t in zip(x.shape, shape)])

    wh = jnp.concatenate([raw["wm"], raw["wl"]], axis=1)   # [H, 2A]
    bh = jnp.concatenate([raw["bm"], raw["bl"]], axis=1)   # [1, 2A]

    # per-column clamp bounds: mean cols pass through, log_std (and pad) cols
    # clamp to [-20, 2]; clip(0) = 0 keeps the padding columns inert.
    col = jnp.arange(P_pad)[None, :]
    lo = jnp.where(col < A, -jnp.inf, -20.0).astype(jnp.float32)
    hi = jnp.where(col < A, jnp.inf, 2.0).astype(jnp.float32)

    return dict(
        w1=pad_to(raw["w1"], (S_pad, H_pad)).astype(jnp.bfloat16),
        b1=pad_to(raw["b1"], (1, H_pad)).astype(jnp.float32),
        w2=pad_to(raw["w2"], (H_pad, H_pad)).astype(jnp.bfloat16),
        b2=pad_to(raw["b2"], (1, H_pad)).astype(jnp.float32),
        wh=pad_to(wh, (H_pad, P_pad)).astype(jnp.bfloat16),
        bh=pad_to(bh, (1, P_pad)).astype(jnp.float32),
        lo=lo, hi=hi,
    )


@functools.partial(jax.jit, static_argnames=("action_dim", "block_b"))
def actor_forward(state, packed, *, action_dim, block_b=None):
    """state: [B, state_dim] f32 (or bf16). packed: output of pack_actor_params.

    Returns (mean, log_std), each [B, action_dim] f32.
    """
    B, S = state.shape
    S_pad, H_pad = packed["w1"].shape
    P_pad = packed["wh"].shape[1]
    A = action_dim

    # Batch tile: one grid step on single-TC chips, >=2 parallel steps on v7x.
    if block_b is None:
        n_steps = _default_num_parallel_steps()
        TB = _round_up(pl.cdiv(B, n_steps), SUBLANE)
    else:
        TB = min(int(block_b), _round_up(B, SUBLANE))
    TB = max(SUBLANE, min(TB, 2048))          # bound per-step VMEM
    B_pad = _round_up(B, TB)

    # bf16 state tile; pad only batch remainder + tiny feature remainder.
    x = state.astype(jnp.bfloat16)
    if (B_pad, S_pad) != (B, S):
        x = jnp.pad(x, ((0, B_pad - B), (0, S_pad - S)))

    def batch_spec(shape):       # tiles that move with the batch grid
        return pl.BlockSpec(shape, lambda i: (i, 0))

    def resident_spec(shape):    # weights/biases: constant block -> DMA'd once
        return pl.BlockSpec(shape, lambda i: (0, 0))

    flops = 2 * B_pad * (S_pad * H_pad + H_pad * H_pad + H_pad * P_pad)
    bytes_accessed = int(
        x.size * x.dtype.itemsize
        + sum(int(v.size) * v.dtype.itemsize for v in packed.values())
        + B_pad * P_pad * 4
    )

    y = pl.pallas_call(
        actor_fused_kernel,
        out_shape=jax.ShapeDtypeStruct((B_pad, P_pad), jnp.float32),
        grid=(B_pad // TB,),
        in_specs=[
            batch_spec((TB, S_pad)),        # x (bf16)
            resident_spec((S_pad, H_pad)),  # w1
            resident_spec((1, H_pad)),      # b1
            resident_spec((H_pad, H_pad)),  # w2
            resident_spec((1, H_pad)),      # b2
            resident_spec((H_pad, P_pad)),  # fused head weight
            resident_spec((1, P_pad)),      # fused head bias
            resident_spec((1, P_pad)),      # clamp lo
            resident_spec((1, P_pad)),      # clamp hi
        ],
        out_specs=batch_spec((TB, P_pad)),
        compiler_params=pltpu.CompilerParams(
            dimension_semantics=("parallel",),
        ),
        cost_estimate=pl.CostEstimate(
            flops=flops, transcendentals=0, bytes_accessed=bytes_accessed),
    )(x, packed["w1"], packed["b1"], packed["w2"], packed["b2"],
      packed["wh"], packed["bh"], packed["lo"], packed["hi"])

    # NOTE: a consumer that accepts the packed [B, 2A] block (or slices inside
    # its own fusion) can skip these two slice ops entirely.
    mean = y[:B, :A]
    log_std = y[:B, A:2 * A]
    return mean, log_std


def actor_forward_ref(state, raw):
    """Pure-JAX reference with the same bf16 weight/activation casts as the kernel."""
    def mm(a_bf16, w):
        return jnp.dot(a_bf16, w.astype(jnp.bfloat16),
                       preferred_element_type=jnp.float32)

    x = state.astype(jnp.bfloat16)
    h = jnp.maximum(mm(x, raw["w1"]) + raw["b1"], 0.0).astype(jnp.bfloat16)
    h = jnp.maximum(mm(h, raw["w2"]) + raw["b2"], 0.0).astype(jnp.bfloat16)
    mean = mm(h, raw["wm"]) + raw["bm"]
    log_std = jnp.clip(mm(h, raw["wl"]) + raw["bl"], -20.0, 2.0)
    return mean, log_std


# TODO(synk): ActorNetwork.sample() (rsample + tanh squash + log-prob) is
# host-side stochastic post-processing; only forward() is implemented as a kernel.

if __name__ == "__main__":
    # hidden_dim matches the module default (256); odd state/action/batch sizes
    # exercise the (small) padding path.
    STATE_DIM, ACTION_DIM, HIDDEN_DIM = 17, 6, 256
    B = 64

    key = jax.random.PRNGKey(0)
    k_params, k_state = jax.random.split(key)
    raw = init_actor_params(k_params, STATE_DIM, ACTION_DIM, HIDDEN_DIM)
    packed = pack_actor_params(raw)
    state = jax.random.normal(k_state, (B, STATE_DIM), jnp.float32)

    # auto tile (single step on v5e/v6e, two parallel steps on v7x)
    mean, log_std = actor_forward(state, packed, action_dim=ACTION_DIM)
    jax.block_until_ready((mean, log_std))

    mean_ref, log_std_ref = actor_forward_ref(state, raw)
    assert mean.shape == (B, ACTION_DIM) and log_std.shape == (B, ACTION_DIM)
    assert jnp.allclose(mean, mean_ref, atol=2e-2, rtol=2e-2), \
        float(jnp.max(jnp.abs(mean - mean_ref)))
    assert jnp.allclose(log_std, log_std_ref, atol=2e-2, rtol=2e-2), \
        float(jnp.max(jnp.abs(log_std - log_std_ref)))
    assert bool(jnp.all(log_std >= -20.0)) and bool(jnp.all(log_std <= 2.0))

    # explicit multi-step batch grid path (grid=(2,)) must match
    mean2, log_std2 = actor_forward(state, packed, action_dim=ACTION_DIM,
                                    block_b=32)
    jax.block_until_ready((mean2, log_std2))
    assert jnp.allclose(mean2, mean, atol=1e-5, rtol=1e-5)
    assert jnp.allclose(log_std2, log_std, atol=1e-5, rtol=1e-5)

    print("KERNEL_OK")
</pallas_src>

<mosaic_0001>
module attributes {stable_mosaic.version = 11 : i64} {
  func.func @actor_fused_kernel(%arg0: i32, %arg1: memref<64x32xbf16, #tpu.memory_space<vmem>>, %arg2: memref<32x256xbf16, #tpu.memory_space<vmem>>, %arg3: memref<1x256xf32, #tpu.memory_space<vmem>>, %arg4: memref<256x256xbf16, #tpu.memory_space<vmem>>, %arg5: memref<1x256xf32, #tpu.memory_space<vmem>>, %arg6: memref<256x128xbf16, #tpu.memory_space<vmem>>, %arg7: memref<1x128xf32, #tpu.memory_space<vmem>>, %arg8: memref<1x128xf32, #tpu.memory_space<vmem>>, %arg9: memref<1x128xf32, #tpu.memory_space<vmem>>, %arg10: memref<64x128xf32, #tpu.memory_space<vmem>>) attributes {dimension_semantics = [#tpu.dimension_semantics<parallel>], iteration_bounds = array<i64: 1>, scalar_prefetch = 0 : i64, scratch_operands = 0 : i64, tpu.core_type = #tpu.core_type<tc>, window_params = [{transform_indices = @transform_0, window_bounds = array<i64: 64, 32>}, {pipeline_mode = #tpu.pipeline_mode<synchronous>, transform_indices = @transform_1, window_bounds = array<i64: 32, 256>}, {pipeline_mode = #tpu.pipeline_mode<synchronous>, transform_indices = @transform_2, window_bounds = array<i64: 1, 256>}, {pipeline_mode = #tpu.pipeline_mode<synchronous>, transform_indices = @transform_3, window_bounds = array<i64: 256, 256>}, {pipeline_mode = #tpu.pipeline_mode<synchronous>, transform_indices = @transform_4, window_bounds = array<i64: 1, 256>}, {pipeline_mode = #tpu.pipeline_mode<synchronous>, transform_indices = @transform_5, window_bounds = array<i64: 256, 128>}, {pipeline_mode = #tpu.pipeline_mode<synchronous>, transform_indices = @transform_6, window_bounds = array<i64: 1, 128>}, {pipeline_mode = #tpu.pipeline_mode<synchronous>, transform_indices = @transform_7, window_bounds = array<i64: 1, 128>}, {pipeline_mode = #tpu.pipeline_mode<synchronous>, transform_indices = @transform_8, window_bounds = array<i64: 1, 128>}, {transform_indices = @transform_9, window_bounds = array<i64: 64, 128>}]} {
    %c0 = arith.constant 0 : index
    %c0_0 = arith.constant 0 : index
    %0 = vector.load %arg1[%c0, %c0_0] : memref<64x32xbf16, #tpu.memory_space<vmem>>, vector<64x32xbf16>
    %c0_1 = arith.constant 0 : index
    %c0_2 = arith.constant 0 : index
    %1 = vector.load %arg2[%c0_1, %c0_2] : memref<32x256xbf16, #tpu.memory_space<vmem>>, vector<32x256xbf16>
    %cst = arith.constant dense<0.000000e+00> : vector<64x256xf32>
    %2 = tpu.matmul %0, %1, %cst {dimension_numbers = #tpu.dot_dimension_numbers<[1], [0], [0], [1], [0, 0, 1, 1], [], []>} : vector<64x32xbf16>, vector<32x256xbf16>, vector<64x256xf32> -> vector<64x256xf32>
    %c0_3 = arith.constant 0 : index
    %c0_4 = arith.constant 0 : index
    %3 = vector.load %arg3[%c0_3, %c0_4] : memref<1x256xf32, #tpu.memory_space<vmem>>, vector<1x256xf32>
    %4 = vector.broadcast %3 : vector<1x256xf32> to vector<64x256xf32>
    %5 = arith.addf %2, %4 : vector<64x256xf32>
    %cst_5 = arith.constant 0.000000e+00 : f32
    %6 = vector.broadcast %cst_5 : f32 to vector<64x256xf32>
    %7 = arith.maximumf %5, %6 : vector<64x256xf32>
    %8 = arith.truncf %7 : vector<64x256xf32> to vector<64x256xbf16>
    %c0_6 = arith.constant 0 : index
    %c0_7 = arith.constant 0 : index
    %9 = vector.load %arg4[%c0_6, %c0_7] : memref<256x256xbf16, #tpu.memory_space<vmem>>, vector<256x256xbf16>
    %cst_8 = arith.constant dense<0.000000e+00> : vector<64x256xf32>
    %10 = tpu.matmul %8, %9, %cst_8 {dimension_numbers = #tpu.dot_dimension_numbers<[1], [0], [0], [1], [0, 0, 1, 1], [], []>} : vector<64x256xbf16>, vector<256x256xbf16>, vector<64x256xf32> -> vector<64x256xf32>
    %c0_9 = arith.constant 0 : index
    %c0_10 = arith.constant 0 : index
    %11 = vector.load %arg5[%c0_9, %c0_10] : memref<1x256xf32, #tpu.memory_space<vmem>>, vector<1x256xf32>
    %12 = vector.broadcast %11 : vector<1x256xf32> to vector<64x256xf32>
    %13 = arith.addf %10, %12 : vector<64x256xf32>
    %cst_11 = arith.constant 0.000000e+00 : f32
    %14 = vector.broadcast %cst_11 : f32 to vector<64x256xf32>
    %15 = arith.maximumf %13, %14 : vector<64x256xf32>
    %16 = arith.truncf %15 : vector<64x256xf32> to vector<64x256xbf16>
    %c0_12 = arith.constant 0 : index
    %c0_13 = arith.constant 0 : index
    %17 = vector.load %arg6[%c0_12, %c0_13] : memref<256x128xbf16, #tpu.memory_space<vmem>>, vector<256x128xbf16>
    %cst_14 = arith.constant dense<0.000000e+00> : vector<64x128xf32>
    %18 = tpu.matmul %16, %17, %cst_14 {dimension_numbers = #tpu.dot_dimension_numbers<[1], [0], [0], [1], [0, 0, 1, 1], [], []>} : vector<64x256xbf16>, vector<256x128xbf16>, vector<64x128xf32> -> vector<64x128xf32>
    %c0_15 = arith.constant 0 : index
    %c0_16 = arith.constant 0 : index
    %19 = vector.load %arg7[%c0_15, %c0_16] : memref<1x128xf32, #tpu.memory_space<vmem>>, vector<1x128xf32>
    %20 = vector.broadcast %19 : vector<1x128xf32> to vector<64x128xf32>
    %21 = arith.addf %18, %20 : vector<64x128xf32>
    %c0_17 = arith.constant 0 : index
    %c0_18 = arith.constant 0 : index
    %22 = vector.load %arg8[%c0_17, %c0_18] : memref<1x128xf32, #tpu.memory_space<vmem>>, vector<1x128xf32>
    %23 = vector.broadcast %22 : vector<1x128xf32> to vector<64x128xf32>
    %24 = arith.maximumf %21, %23 : vector<64x128xf32>
    %c0_19 = arith.constant 0 : index
    %c0_20 = arith.constant 0 : index
    %25 = vector.load %arg9[%c0_19, %c0_20] : memref<1x128xf32, #tpu.memory_space<vmem>>, vector<1x128xf32>
    %26 = vector.broadcast %25 : vector<1x128xf32> to vector<64x128xf32>
    %27 = arith.minimumf %24, %26 : vector<64x128xf32>
    %c0_21 = arith.constant 0 : index
    %c0_22 = arith.constant 0 : index
    %28 = vector.load %arg10[%c0_21, %c0_22] : memref<64x128xf32, #tpu.memory_space<vmem>>, vector<64x128xf32>
    tpu.vector_store %arg10[%c0_21, %c0_22], %27 {strides = array<i32>} : memref<64x128xf32, #tpu.memory_space<vmem>>, vector<64x128xf32>,
    return
  }
  func.func @transform_0(%arg0: i32) -> (i32, i32) {
    %c0_i32 = arith.constant 0 : i32
    %c0_i32_0 = arith.constant 0 : i32
    return %arg0, %c0_i32 : i32, i32
  }
  func.func @transform_1(%arg0: i32) -> (i32, i32) {
    %c0_i32 = arith.constant 0 : i32
    %c0_i32_0 = arith.constant 0 : i32
    %c0_i32_1 = arith.constant 0 : i32
    return %c0_i32, %c0_i32_0 : i32, i32
  }
  func.func @transform_2(%arg0: i32) -> (i32, i32) {
    %c0_i32 = arith.constant 0 : i32
    %c0_i32_0 = arith.constant 0 : i32
    %c0_i32_1 = arith.constant 0 : i32
    return %c0_i32, %c0_i32_0 : i32, i32
  }
  func.func @transform_3(%arg0: i32) -> (i32, i32) {
    %c0_i32 = arith.constant 0 : i32
    %c0_i32_0 = arith.constant 0 : i32
    %c0_i32_1 = arith.constant 0 : i32
    return %c0_i32, %c0_i32_0 : i32, i32
  }
  func.func @transform_4(%arg0: i32) -> (i32, i32) {
    %c0_i32 = arith.constant 0 : i32
    %c0_i32_0 = arith.constant 0 : i32
    %c0_i32_1 = arith.constant 0 : i32
    return %c0_i32, %c0_i32_0 : i32, i32
  }
  func.func @transform_5(%arg0: i32) -> (i32, i32) {
    %c0_i32 = arith.constant 0 : i32
    %c0_i32_0 = arith.constant 0 : i32
    %c0_i32_1 = arith.constant 0 : i32
    return %c0_i32, %c0_i32_0 : i32, i32
  }
  func.func @transform_6(%arg0: i32) -> (i32, i32) {
    %c0_i32 = arith.constant 0 : i32
    %c0_i32_0 = arith.constant 0 : i32
    %c0_i32_1 = arith.constant 0 : i32
    return %c0_i32, %c0_i32_0 : i32, i32
  }
  func.func @transform_7(%arg0: i32) -> (i32, i32) {
    %c0_i32 = arith.constant 0 : i32
    %c0_i32_0 = arith.constant 0 : i32
    %c0_i32_1 = arith.constant 0 : i32
    return %c0_i32, %c0_i32_0 : i32, i32
  }
  func.func @transform_8(%arg0: i32) -> (i32, i32) {
    %c0_i32 = arith.constant 0 : i32
    %c0_i32_0 = arith.constant 0 : i32
    %c0_i32_1 = arith.constant 0 : i32
    return %c0_i32, %c0_i32_0 : i32, i32
  }
  func.func @transform_9(%arg0: i32) -> (i32, i32) {
    %c0_i32 = arith.constant 0 : i32
    %c0_i32_0 = arith.constant 0 : i32
    return %arg0, %c0_i32 : i32, i32
  }
}

</mosaic_0001>

<llo_original>
// kernel: actor_forward.1
$region0: #{actor_forward.1}
  #allocation0 [shape = 'u32[]', space=smem, size = 0x4, offset = 0x4, fixed_abs, tag = 'smem constant byte address 0x4 - core index']
  #allocation1 [shape = 'u32[72,128]{1,0:T(1,128)}', space=vmem, size = 0x9000, scoped, tag = 'internal scratch']
  %s0 = inlined_call_operand.vmem [shape: bf16[64,32], index: 0, kind: input, shape index: {}]
  %s1 = inlined_call_operand.hbm [shape: bf16[32,256], index: 1, kind: input, shape index: {}]
  %s2 = inlined_call_operand.vmem [shape: f32[1,256], index: 2, kind: input, shape index: {}]
  %s3 = inlined_call_operand.hbm [shape: bf16[256,256], index: 3, kind: input, shape index: {}]
  %s4 = inlined_call_operand.vmem [shape: f32[1,256], index: 4, kind: input, shape index: {}]
  %s5 = inlined_call_operand.vmem [shape: bf16[256,128], index: 5, kind: input, shape index: {}]
  %s6 = inlined_call_operand.vmem [shape: f32[1,128], index: 6, kind: input, shape index: {}]
  %s7 = inlined_call_operand.vmem [shape: f32[1,128], index: 7, kind: input, shape index: {}]
  %s8 = inlined_call_operand.vmem [shape: f32[1,128], index: 8, kind: input, shape index: {}]
  %s9 = inlined_call_operand.vmem [shape: f32[64,128], index: 9, kind: output, shape index: {}]
  %s10 = sld [smem:[#allocation0]]
  $region54: #{actor_forward.1} parent=0
    _
  %s12 = ssub.s32 1, %s10
  %s13 = scalar_select 0, %s12, %s10
  $region1: #{actor_forward.1} parent=0
    #allocation2 [shape = 'u8[16384]{0}', space=vmem, size = 0x4000, scoped, tag = 'input window, operand 1, single buffered']
    #allocation3 [shape = 's32[1]{0}', space=sflag, size = 0x4, scoped, tag = 'scoped memory for actor_forward.1']
    #allocation4 [shape = 'u8[131072]{0}', space=vmem, size = 0x20000, scoped, tag = 'input window, operand 3, single buffered']
    #allocation5 [shape = 's32[1]{0}', space=sflag, size = 0x4, scoped, tag = 'scoped memory for actor_forward.1']
    %14 = vsyncpa [#allocation3], 0
    %15 = vsyncpa [#allocation5], 0
    // Predicated region
    $region2: #{actor_forward.1} parent=1 // pred_check
      _
    $region3: #{actor_forward.1} parent=1 // pred_check_branch
      %17 = sbr.rel (0) target = $region5
    $region4: #{actor_forward.1} parent=1 // pred_region
      _
    $region5: #{actor_forward.1} parent=1 // pred_fallthru
      _
    // Predicated region
    $region6: #{actor_forward.1} parent=1 // pred_check
      _
    $region7: #{actor_forward.1} parent=1 // pred_check_branch
      %19 = sbr.rel (0) target = $region9
    $region8: #{actor_forward.1} parent=1 // pred_region
      %21 = vsyncadd [#allocation3], 0
      %s22 = sshll.u32 %s1, 4
      %s23 = int_to_ptr.hbm [resolvable:$true] %s22
      %s24 = sshll.u32 [#allocation2], 4
      %s25 = int_to_ptr.vmem [resolvable:$true] %s24
      %30 = dma.hbm_to_vmem [thread:$0]  %s23, 512, %s25, [#allocation3], 128, 128, 8
    $region9: #{actor_forward.1} parent=1 // pred_fallthru
      _
    // Predicated region
    $region10: #{actor_forward.1} parent=1 // pred_check
      _
    $region11: #{actor_forward.1} parent=1 // pred_check_branch
      %32 = sbr.rel (0) target = $region13
    $region12: #{actor_forward.1} parent=1 // pred_region
      _
    $region13: #{actor_forward.1} parent=1 // pred_fallthru
      _
    // Predicated region
    $region14: #{actor_forward.1} parent=1 // pred_check
      _
    $region15: #{actor_forward.1} parent=1 // pred_check_branch
      %34 = sbr.rel (0) target = $region17
    $region16: #{actor_forward.1} parent=1 // pred_region
      %36 = vsyncadd [#allocation5], 0
      %s37 = sshll.u32 %s3, 4
      %s38 = int_to_ptr.hbm [resolvable:$true] %s37
      %s39 = sshll.u32 [#allocation4], 4
      %s40 = int_to_ptr.vmem [resolvable:$true] %s39
      %45 = dma.hbm_to_vmem [thread:$0]  %s38, 4096, %s40, [#allocation5], 128, 128, 8
    $region17: #{actor_forward.1} parent=1 // pred_fallthru
      _
    // Predicated region
    $region18: #{actor_forward.1} parent=1 // pred_check
      _
    $region19: #{actor_forward.1} parent=1 // pred_check_branch
      %47 = sbr.rel (0) target = $region21
    $region20: #{actor_forward.1} parent=1 // pred_region
      _
    $region21: #{actor_forward.1} parent=1 // pred_fallthru
      _
    // Predicated region
    $region22: #{actor_forward.1} parent=1 // pred_check
      _
    $region23: #{actor_forward.1} parent=1 // pred_check_branch
      %49 = sbr.rel (0) target = $region25
    $region24: #{actor_forward.1} parent=1 // pred_region
      _
    $region25: #{actor_forward.1} parent=1 // pred_fallthru
      _
    // Predicated region
    $region26: #{actor_forward.1} parent=1 // pred_check
      _
    $region27: #{actor_forward.1} parent=1 // pred_check_branch
      %51 = sbr.rel (0) target = $region29
    $region28: #{actor_forward.1} parent=1 // pred_region
      _
    $region29: #{actor_forward.1} parent=1 // pred_fallthru
      _
    // Predicated region
    $region30: #{actor_forward.1} parent=1 // pred_check
      _
    $region31: #{actor_forward.1} parent=1 // pred_check_branch
      %53 = sbr.rel (0) target = $region33
    $region32: #{actor_forward.1} parent=1 // pred_region
      _
    $region33: #{actor_forward.1} parent=1 // pred_fallthru
      _
    // Predicated region
    $region34: #{actor_forward.1} parent=1 // pred_check
      _
    $region35: #{actor_forward.1} parent=1 // pred_check_branch
      %55 = sbr.rel (0) target = $region37
    $region36: #{actor_forward.1} parent=1 // pred_region
      _
    $region37: #{actor_forward.1} parent=1 // pred_fallthru
      _
    // Predicated region
    $region38: #{actor_forward.1} parent=1 // pred_check
      _
    $region39: #{actor_forward.1} parent=1 // pred_check_branch
      %57 = sbr.rel (0) target = $region41
    $region40: #{actor_forward.1} parent=1 // pred_region
      %59 = dma.done [#allocation3], 512
    $region41: #{actor_forward.1} parent=1 // pred_fallthru
      _
    // Predicated region
    $region42: #{actor_forward.1} parent=1 // pred_check
      _
    $region43: #{actor_forward.1} parent=1 // pred_check_branch
      %61 = sbr.rel (0) target = $region45
    $region44: #{actor_forward.1} parent=1 // pred_region
      %63 = dma.done [#allocation5], 4096
    $region45: #{actor_forward.1} parent=1 // pred_fallthru
      _
    %v65 = vld [vmem:[%s0] sm:$0xf]
    %v66 = vld [vmem:[%s0 + $0x4] sm:$0xf]
    %v67 = vld [vmem:[%s0 + $0x8] sm:$0xf]
    %v68 = vld [vmem:[%s0 + $0xc] sm:$0xf]
    %v69 = vld [vmem:[%s0 + $0x10] sm:$0xf]
    %v70 = vld [vmem:[%s0 + $0x14] sm:$0xf]
    %v71 = vld [vmem:[%s0 + $0x18] sm:$0xf]
    %v72 = vld [vmem:[%s0 + $0x1c] sm:$0xf]
    %v73 = vld [vmem:[#allocation2] sm:$0xff]
    %v74 = vld [vmem:[#allocation2 + $0x8] sm:$0xff]
    %v75 = vld [vmem:[#allocation2 + $0x10] sm:$0xff]
    %v76 = vld [vmem:[#allocation2 + $0x18] sm:$0xff]
    %v77 = vld [vmem:[%s2] sm:$0x3]
    %v79 = vperm.slane %v77, 0
    %v80 = vperm.slane %v77, 1
    %v91 = vunpack.c.l.b16 %v65
    %v92 = vunpack.c.l.b16 %v66
    %v93 = vunpack.c.l.b16 %v67
    %v94 = vunpack.c.l.b16 %v68
    %v95 = vunpack.c.l.b16 %v69
    %v96 = vunpack.c.l.b16 %v70
    %v97 = vunpack.c.l.b16 %v71
    %v98 = vunpack.c.l.b16 %v72
    %v99 = vpack.c.b16 %v92, %v91
    %v100 = vpack.c.b16 %v94, %v93
    %v101 = vpack.c.b16 %v96, %v95
    %v102 = vpack.c.b16 %v98, %v97
    %v107 = vunpack.c.l.b16 %v73
    %v108 = vunpack.c.h.b16 %v73
    %v109 = vunpack.c.l.b16 %v74
    %v110 = vunpack.c.h.b16 %v74
    %v111 = vunpack.c.l.b16 %v75
    %v112 = vunpack.c.h.b16 %v75
    %v113 = vunpack.c.l.b16 %v76
    %v114 = vunpack.c.h.b16 %v76
    %v115 = vpack.c.b16 %v109, %v107
    %v116 = vpack.c.b16 %v110, %v108
    %v117 = vpack.c.b16 %v113, %v111
    %v118 = vpack.c.b16 %v114, %v112
    %vm123 = vcmask 261120
    %v125 = vsel %vm123, %v99, 0
    %v128 = vsel %vm123, %v100, 0
    %v131 = vsel %vm123, %v101, 0
    %v134 = vsel %vm123, %v102, 0
    %136 = vmatpush.bf16.msra.mxu0 0
    %137 = vmatpush.bf16.msra.mxu0 0
    %138 = vmatpush.bf16.msra.mxu0 0
    %139 = vmatpush.bf16.msra.mxu0 0
    %140 = vmatpush.bf16.msra.mxu0 0
    %141 = vmatpush.bf16.msra.mxu0 0
    %142 = vmatpush.bf16.msra.mxu0 %v117
    %143 = vmatpush.bf16.msra.mxu0 %v115
    %144 = vmatmul.bf16.gmra.mxu0 %v125
    %v145 = vpop.f32.mrf.mxu0
    %v146 = vadd.f32 %v79, %v145
    %v147 = vpop.f32.mrf.mxu0
    %v148 = vadd.f32 %v79, %v147
    %149 = vmatmul.bf16.gmra.mxu0 %v128
    %v150 = vpop.f32.mrf.mxu0
    %v151 = vadd.f32 %v79, %v150
    %v152 = vpop.f32.mrf.mxu0
    %v153 = vadd.f32 %v79, %v152
    %154 = vmatmul.bf16.gmra.mxu0 %v131
    %v155 = vpop.f32.mrf.mxu0
    %v156 = vadd.f32 %v79, %v155
    %v157 = vpop.f32.mrf.mxu0
    %v158 = vadd.f32 %v79, %v157
    %159 = vmatmul.bf16.gmra.mxu0 %v134
    %v160 = vpop.f32.mrf.mxu0
    %v161 = vadd.f32 %v79, %v160
    %v162 = vpop.f32.mrf.mxu0
    %v163 = vadd.f32 %v79, %v162
    %164 = vdwg.mxu0
    %165 = vmatpush.bf16.msra.mxu0 0
    %166 = vmatpush.bf16.msra.mxu0 0
    %167 = vmatpush.bf16.msra.mxu0 0
    %168 = vmatpush.bf16.msra.mxu0 0
    %169 = vmatpush.bf16.msra.mxu0 0
    %170 = vmatpush.bf16.msra.mxu0 0
    %171 = vmatpush.bf16.msra.mxu0 %v118
    %172 = vmatpush.bf16.msra.mxu0 %v116
    %173 = vmatmul.bf16.gmra.mxu0 %v125
    %v174 = vpop.f32.mrf.mxu0
    %v175 = vadd.f32 %v80, %v174
    %v176 = vpop.f32.mrf.mxu0
    %v177 = vadd.f32 %v80, %v176
    %178 = vmatmul.bf16.gmra.mxu0 %v128
    %v179 = vpop.f32.mrf.mxu0
    %v180 = vadd.f32 %v80, %v179
    %v181 = vpop.f32.mrf.mxu0
    %v182 = vadd.f32 %v80, %v181
    %183 = vmatmul.bf16.gmra.mxu0 %v131
    %v184 = vpop.f32.mrf.mxu0
    %v185 = vadd.f32 %v80, %v184
    %v186 = vpop.f32.mrf.mxu0
    %v187 = vadd.f32 %v80, %v186
    %188 = vmatmul.bf16.gmra.mxu0 %v134
    %v189 = vpop.f32.mrf.mxu0
    %v190 = vadd.f32 %v80, %v189
    %v191 = vpop.f32.mrf.mxu0
    %v192 = vadd.f32 %v80, %v191
    %193 = vdwg.mxu0
    %v194 = vmax.f32 %v146, 0.0
    %v195 = vmax.f32 %v175, 0.0
    %v196 = vmax.f32 %v148, 0.0
    %v197 = vmax.f32 %v177, 0.0
    %v198 = vmax.f32 %v151, 0.0
    %v199 = vmax.f32 %v180, 0.0
    %v200 = vmax.f32 %v153, 0.0
    %v201 = vmax.f32 %v182, 0.0
    %v202 = vmax.f32 %v156, 0.0
    %v203 = vmax.f32 %v185, 0.0
    %v204 = vmax.f32 %v158, 0.0
    %v205 = vmax.f32 %v187, 0.0
    %v206 = vmax.f32 %v161, 0.0
    %v207 = vmax.f32 %v190, 0.0
    %v208 = vmax.f32 %v163, 0.0
    %v209 = vmax.f32 %v192, 0.0
    %v210 = vpack.c.bf16 %v196, %v194
    %v211 = vpack.c.bf16 %v197, %v195
    %v212 = vpack.c.bf16 %v200, %v198
    %v213 = vpack.c.bf16 %v201, %v199
    %v214 = vpack.c.bf16 %v204, %v202
    %v215 = vpack.c.bf16 %v205, %v203
    %v216 = vpack.c.bf16 %v208, %v206
    %v217 = vpack.c.bf16 %v209, %v207
    %v218 = vld [vmem:[#allocation4] sm:$0xff]
    %v219 = vld [vmem:[#allocation4 + $0x8] sm:$0xff]
    %v220 = vld [vmem:[#allocation4 + $0x10] sm:$0xff]
    %v221 = vld [vmem:[#allocation4 + $0x18] sm:$0xff]
    %v222 = vld [vmem:[#allocation4 + $0x20] sm:$0xff]
    %v223 = vld [vmem:[#allocation4 + $0x28] sm:$0xff]
    %v224 = vld [vmem:[#allocation4 + $0x30] sm:$0xff]
    %v225 = vld [vmem:[#allocation4 + $0x38] sm:$0xff]
    %v226 = vld [vmem:[#allocation4 + $0x40] sm:$0xff]
    %v227 = vld [vmem:[#allocation4 + $0x48] sm:$0xff]
    %v228 = vld [vmem:[#allocation4 + $0x50] sm:$0xff]
    %v229 = vld [vmem:[#allocation4 + $0x58] sm:$0xff]
    %v230 = vld [vmem:[#allocation4 + $0x60] sm:$0xff]
    %v231 = vld [vmem:[#allocation4 + $0x68] sm:$0xff]
    %v232 = vld [vmem:[#allocation4 + $0x70] sm:$0xff]
    %v233 = vld [vmem:[#allocation4 + $0x78] sm:$0xff]
    %v234 = vld [vmem:[#allocation4 + $0x80] sm:$0xff]
    %v235 = vld [vmem:[#allocation4 + $0x88] sm:$0xff]
    %v236 = vld [vmem:[#allocation4 + $0x90] sm:$0xff]
    %v237 = vld [vmem:[#allocation4 + $0x98] sm:$0xff]
    %v238 = vld [vmem:[#allocation4 + $0xa0] sm:$0xff]
    %v239 = vld [vmem:[#allocation4 + $0xa8] sm:$0xff]
    %v240 = vld [vmem:[#allocation4 + $0xb0] sm:$0xff]
    %v241 = vld [vmem:[#allocation4 + $0xb8] sm:$0xff]
    %v242 = vld [vmem:[#allocation4 + $0xc0] sm:$0xff]
    %v243 = vld [vmem:[#allocation4 + $0xc8] sm:$0xff]
    %v244 = vld [vmem:[#allocation4 + $0xd0] sm:$0xff]
    %v245 = vld [vmem:[#allocation4 + $0xd8] sm:$0xff]
    %v246 = vld [vmem:[#allocation4 + $0xe0] sm:$0xff]
    %v247 = vld [vmem:[#allocation4 + $0xe8] sm:$0xff]
    %v248 = vld [vmem:[#allocation4 + $0xf0] sm:$0xff]
    %v249 = vld [vmem:[#allocation4 + $0xf8] sm:$0xff]
    %v250 = vld [vmem:[%s4] sm:$0x3]
    %v252 = vperm.slane %v250, 0
    %v253 = vperm.slane %v250, 1
    %v288 = vunpack.c.l.b16 %v218
    %v289 = vunpack.c.h.b16 %v218
    %v290 = vunpack.c.l.b16 %v219
    %v291 = vunpack.c.h.b16 %v219
    %v292 = vunpack.c.l.b16 %v220
    %v293 = vunpack.c.h.b16 %v220
    %v294 = vunpack.c.l.b16 %v221
    %v295 = vunpack.c.h.b16 %v221
    %v296 = vunpack.c.l.b16 %v222
    %v297 = vunpack.c.h.b16 %v222
    %v298 = vunpack.c.l.b16 %v223
    %v299 = vunpack.c.h.b16 %v223
    %v300 = vunpack.c.l.b16 %v224
    %v301 = vunpack.c.h.b16 %v224
    %v302 = vunpack.c.l.b16 %v225
    %v303 = vunpack.c.h.b16 %v225
    %v304 = vunpack.c.l.b16 %v226
    %v305 = vunpack.c.h.b16 %v226
    %v306 = vunpack.c.l.b16 %v227
    %v307 = vunpack.c.h.b16 %v227
    %v308 = vunpack.c.l.b16 %v228
    %v309 = vunpack.c.h.b16 %v228
    %v310 = vunpack.c.l.b16 %v229
    %v311 = vunpack.c.h.b16 %v229
    %v312 = vunpack.c.l.b16 %v230
    %v313 = vunpack.c.h.b16 %v230
    %v314 = vunpack.c.l.b16 %v231
    %v315 = vunpack.c.h.b16 %v231
    %v316 = vunpack.c.l.b16 %v232
    %v317 = vunpack.c.h.b16 %v232
    %v318 = vunpack.c.l.b16 %v233
    %v319 = vunpack.c.h.b16 %v233
    %v320 = vunpack.c.l.b16 %v234
    %v321 = vunpack.c.h.b16 %v234
    %v322 = vunpack.c.l.b16 %v235
    %v323 = vunpack.c.h.b16 %v235
    %v324 = vunpack.c.l.b16 %v236
    %v325 = vunpack.c.h.b16 %v236
    %v326 = vunpack.c.l.b16 %v237
    %v327 = vunpack.c.h.b16 %v237
    %v328 = vunpack.c.l.b16 %v238
    %v329 = vunpack.c.h.b16 %v238
    %v330 = vunpack.c.l.b16 %v239
    %v331 = vunpack.c.h.b16 %v239
    %v332 = vunpack.c.l.b16 %v240
    %v333 = vunpack.c.h.b16 %v240
    %v334 = vunpack.c.l.b16 %v241
    %v335 = vunpack.c.h.b16 %v241
    %v336 = vunpack.c.l.b16 %v242
    %v337 = vunpack.c.h.b16 %v242
    %v338 = vunpack.c.l.b16 %v243
    %v339 = vunpack.c.h.b16 %v243
    %v340 = vunpack.c.l.b16 %v244
    %v341 = vunpack.c.h.b16 %v244
    %v342 = vunpack.c.l.b16 %v245
    %v343 = vunpack.c.h.b16 %v245
    %v344 = vunpack.c.l.b16 %v246
    %v345 = vunpack.c.h.b16 %v246
    %v346 = vunpack.c.l.b16 %v247
    %v347 = vunpack.c.h.b16 %v247
    %v348 = vunpack.c.l.b16 %v248
    %v349 = vunpack.c.h.b16 %v248
    %v350 = vunpack.c.l.b16 %v249
    %v351 = vunpack.c.h.b16 %v249
    %v352 = vpack.c.b16 %v290, %v288
    %v353 = vpack.c.b16 %v291, %v289
    %v354 = vpack.c.b16 %v294, %v292
    %v355 = vpack.c.b16 %v295, %v293
    %v356 = vpack.c.b16 %v298, %v296
    %v357 = vpack.c.b16 %v299, %v297
    %v358 = vpack.c.b16 %v302, %v300
    %v359 = vpack.c.b16 %v303, %v301
    %v360 = vpack.c.b16 %v306, %v304
    %v361 = vpack.c.b16 %v307, %v305
    %v362 = vpack.c.b16 %v310, %v308
    %v363 = vpack.c.b16 %v311, %v309
    %v364 = vpack.c.b16 %v314, %v312
    %v365 = vpack.c.b16 %v315, %v313
    %v366 = vpack.c.b16 %v318, %v316
    %v367 = vpack.c.b16 %v319, %v317
    %v368 = vpack.c.b16 %v322, %v320
    %v369 = vpack.c.b16 %v323, %v321
    %v370 = vpack.c.b16 %v326, %v324
    %v371 = vpack.c.b16 %v327, %v325
    %v372 = vpack.c.b16 %v330, %v328
    %v373 = vpack.c.b16 %v331, %v329
    %v374 = vpack.c.b16 %v334, %v332
    %v375 = vpack.c.b16 %v335, %v333
    %v376 = vpack.c.b16 %v338, %v336
    %v377 = vpack.c.b16 %v339, %v337
    %v378 = vpack.c.b16 %v342, %v340
    %v379 = vpack.c.b16 %v343, %v341
    %v380 = vpack.c.b16 %v346, %v344
    %v381 = vpack.c.b16 %v347, %v345
    %v382 = vpack.c.b16 %v350, %v348
    %v383 = vpack.c.b16 %v351, %v349
    %416 = vmatpush.bf16.msra.mxu0 %v366
    %417 = vmatpush.bf16.msra.mxu0 %v364
    %418 = vmatpush.bf16.msra.mxu0 %v362
    %419 = vmatpush.bf16.msra.mxu0 %v360
    %420 = vmatpush.bf16.msra.mxu0 %v358
    %421 = vmatpush.bf16.msra.mxu0 %v356
    %422 = vmatpush.bf16.msra.mxu0 %v354
    %423 = vmatpush.bf16.msra.mxu0 %v352
    %424 = vmatmul.bf16.gmra.mxu0 %v210
    %v425 = vpop.f32.mrf.mxu0
    %v426 = vadd.f32 %v252, %v425
    %v427 = vpop.f32.mrf.mxu0
    %v428 = vadd.f32 %v252, %v427
    %429 = vmatmul.bf16.gmra.mxu0 %v212
    %v430 = vpop.f32.mrf.mxu0
    %v431 = vadd.f32 %v252, %v430
    %v432 = vpop.f32.mrf.mxu0
    %v433 = vadd.f32 %v252, %v432
    %434 = vmatmul.bf16.gmra.mxu0 %v214
    %v435 = vpop.f32.mrf.mxu0
    %v436 = vadd.f32 %v252, %v435
    %v437 = vpop.f32.mrf.mxu0
    %v438 = vadd.f32 %v252, %v437
    %439 = vmatmul.bf16.gmra.mxu0 %v216
    %v440 = vpop.f32.mrf.mxu0
    %v441 = vadd.f32 %v252, %v440
    %v442 = vpop.f32.mrf.mxu0
    %v443 = vadd.f32 %v252, %v442
    %444 = vdwg.mxu0
    %445 = vmatpush.bf16.msra.mxu0 %v382
    %446 = vmatpush.bf16.msra.mxu0 %v380
    %447 = vmatpush.bf16.msra.mxu0 %v378
    %448 = vmatpush.bf16.msra.mxu0 %v376
    %449 = vmatpush.bf16.msra.mxu0 %v374
    %450 = vmatpush.bf16.msra.mxu0 %v372
    %451 = vmatpush.bf16.msra.mxu0 %v370
    %452 = vmatpush.bf16.msra.mxu0 %v368
    %453 = vmatmul.bf16.gmra.mxu0 %v211
    %v454 = vpop.f32.mrf.mxu0
    %v455 = vadd.f32 %v426, %v454
    %v456 = vpop.f32.mrf.mxu0
    %v457 = vadd.f32 %v428, %v456
    %458 = vmatmul.bf16.gmra.mxu0 %v213
    %v459 = vpop.f32.mrf.mxu0
    %v460 = vadd.f32 %v431, %v459
    %v461 = vpop.f32.mrf.mxu0
    %v462 = vadd.f32 %v433, %v461
    %463 = vmatmul.bf16.gmra.mxu0 %v215
    %v464 = vpop.f32.mrf.mxu0
    %v465 = vadd.f32 %v436, %v464
    %v466 = vpop.f32.mrf.mxu0
    %v467 = vadd.f32 %v438, %v466
    %468 = vmatmul.bf16.gmra.mxu0 %v217
    %v469 = vpop.f32.mrf.mxu0
    %v470 = vadd.f32 %v441, %v469
    %v471 = vpop.f32.mrf.mxu0
    %v472 = vadd.f32 %v443, %v471
    %473 = vdwg.mxu0
    %474 = vmatpush.bf16.msra.mxu0 %v367
    %475 = vmatpush.bf16.msra.mxu0 %v365
    %476 = vmatpush.bf16.msra.mxu0 %v363
    %477 = vmatpush.bf16.msra.mxu0 %v361
    %478 = vmatpush.bf16.msra.mxu0 %v359
    %479 = vmatpush.bf16.msra.mxu0 %v357
    %480 = vmatpush.bf16.msra.mxu0 %v355
    %481 = vmatpush.bf16.msra.mxu0 %v353
    %482 = vmatmul.bf16.gmra.mxu0 %v210
    %v483 = vpop.f32.mrf.mxu0
    %v484 = vadd.f32 %v253, %v483
    %v485 = vpop.f32.mrf.mxu0
    %v486 = vadd.f32 %v253, %v485
    %487 = vmatmul.bf16.gmra.mxu0 %v212
    %v488 = vpop.f32.mrf.mxu0
    %v489 = vadd.f32 %v253, %v488
    %v490 = vpop.f32.mrf.mxu0
    %v491 = vadd.f32 %v253, %v490
    %492 = vmatmul.bf16.gmra.mxu0 %v214
    %v493 = vpop.f32.mrf.mxu0
    %v494 = vadd.f32 %v253, %v493
    %v495 = vpop.f32.mrf.mxu0
    %v496 = vadd.f32 %v253, %v495
    %497 = vmatmul.bf16.gmra.mxu0 %v216
    %v498 = vpop.f32.mrf.mxu0
    %v499 = vadd.f32 %v253, %v498
    %v500 = vpop.f32.mrf.mxu0
    %v501 = vadd.f32 %v253, %v500
    %502 = vdwg.mxu0
    %503 = vmatpush.bf16.msra.mxu0 %v383
    %504 = vmatpush.bf16.msra.mxu0 %v381
    %505 = vmatpush.bf16.msra.mxu0 %v379
    %506 = vmatpush.bf16.msra.mxu0 %v377
    %507 = vmatpush.bf16.msra.mxu0 %v375
    %508 = vmatpush.bf16.msra.mxu0 %v373
    %509 = vmatpush.bf16.msra.mxu0 %v371
    %510 = vmatpush.bf16.msra.mxu0 %v369
    %511 = vmatmul.bf16.gmra.mxu0 %v211
    %v512 = vpop.f32.mrf.mxu0
    %v513 = vadd.f32 %v484, %v512
    %v514 = vpop.f32.mrf.mxu0
    %v515 = vadd.f32 %v486, %v514
    %516 = vmatmul.bf16.gmra.mxu0 %v213
    %v517 = vpop.f32.mrf.mxu0
    %v518 = vadd.f32 %v489, %v517
    %v519 = vpop.f32.mrf.mxu0
    %v520 = vadd.f32 %v491, %v519
    %521 = vmatmul.bf16.gmra.mxu0 %v215
    %v522 = vpop.f32.mrf.mxu0
    %v523 = vadd.f32 %v494, %v522
    %v524 = vpop.f32.mrf.mxu0
    %v525 = vadd.f32 %v496, %v524
    %526 = vmatmul.bf16.gmra.mxu0 %v217
    %v527 = vpop.f32.mrf.mxu0
    %v528 = vadd.f32 %v499, %v527
    %v529 = vpop.f32.mrf.mxu0
    %v530 = vadd.f32 %v501, %v529
    %531 = vdwg.mxu0
    %v532 = vmax.f32 %v455, 0.0
    %v533 = vmax.f32 %v513, 0.0
    %v534 = vmax.f32 %v457, 0.0
    %v535 = vmax.f32 %v515, 0.0
    %v536 = vmax.f32 %v460, 0.0
    %v537 = vmax.f32 %v518, 0.0
    %v538 = vmax.f32 %v462, 0.0
    %v539 = vmax.f32 %v520, 0.0
    %v540 = vmax.f32 %v465, 0.0
    %v541 = vmax.f32 %v523, 0.0
    %v542 = vmax.f32 %v467, 0.0
    %v543 = vmax.f32 %v525, 0.0
    %v544 = vmax.f32 %v470, 0.0
    %v545 = vmax.f32 %v528, 0.0
    %v546 = vmax.f32 %v472, 0.0
    %v547 = vmax.f32 %v530, 0.0
    %v548 = vpack.c.bf16 %v534, %v532
    %v549 = vpack.c.bf16 %v535, %v533
    %v550 = vpack.c.bf16 %v538, %v536
    %v551 = vpack.c.bf16 %v539, %v537
    %v552 = vpack.c.bf16 %v542, %v540
    %v553 = vpack.c.bf16 %v543, %v541
    %v554 = vpack.c.bf16 %v546, %v544
    %v555 = vpack.c.bf16 %v547, %v545
    %v556 = vld [vmem:[%s5] sm:$0xf]
    %v557 = vld [vmem:[%s5 + $0x4] sm:$0xf]
    %v558 = vld [vmem:[%s5 + $0x8] sm:$0xf]
    %v559 = vld [vmem:[%s5 + $0xc] sm:$0xf]
    %v560 = vld [vmem:[%s5 + $0x10] sm:$0xf]
    %v561 = vld [vmem:[%s5 + $0x14] sm:$0xf]
    %v562 = vld [vmem:[%s5 + $0x18] sm:$0xf]
    %v563 = vld [vmem:[%s5 + $0x1c] sm:$0xf]
    %v564 = vld [vmem:[%s5 + $0x20] sm:$0xf]
    %v565 = vld [vmem:[%s5 + $0x24] sm:$0xf]
    %v566 = vld [vmem:[%s5 + $0x28] sm:$0xf]
    %v567 = vld [vmem:[%s5 + $0x2c] sm:$0xf]
    %v568 = vld [vmem:[%s5 + $0x30] sm:$0xf]
    %v569 = vld [vmem:[%s5 + $0x34] sm:$0xf]
    %v570 = vld [vmem:[%s5 + $0x38] sm:$0xf]
    %v571 = vld [vmem:[%s5 + $0x3c] sm:$0xf]
    %v572 = vld [vmem:[%s5 + $0x40] sm:$0xf]
    %v573 = vld [vmem:[%s5 + $0x44] sm:$0xf]
    %v574 = vld [vmem:[%s5 + $0x48] sm:$0xf]
    %v575 = vld [vmem:[%s5 + $0x4c] sm:$0xf]
    %v576 = vld [vmem:[%s5 + $0x50] sm:$0xf]
    %v577 = vld [vmem:[%s5 + $0x54] sm:$0xf]
    %v578 = vld [vmem:[%s5 + $0x58] sm:$0xf]
    %v579 = vld [vmem:[%s5 + $0x5c] sm:$0xf]
    %v580 = vld [vmem:[%s5 + $0x60] sm:$0xf]
    %v581 = vld [vmem:[%s5 + $0x64] sm:$0xf]
    %v582 = vld [vmem:[%s5 + $0x68] sm:$0xf]
    %v583 = vld [vmem:[%s5 + $0x6c] sm:$0xf]
    %v584 = vld [vmem:[%s5 + $0x70] sm:$0xf]
    %v585 = vld [vmem:[%s5 + $0x74] sm:$0xf]
    %v586 = vld [vmem:[%s5 + $0x78] sm:$0xf]
    %v587 = vld [vmem:[%s5 + $0x7c] sm:$0xf]
    %v588 = vld [vmem:[%s6] sm:$0x1]
    %v590 = vperm.slane %v588, 0
    %v624 = vunpack.c.l.b16 %v556
    %v625 = vunpack.c.l.b16 %v557
    %v626 = vunpack.c.l.b16 %v558
    %v627 = vunpack.c.l.b16 %v559
    %v628 = vunpack.c.l.b16 %v560
    %v629 = vunpack.c.l.b16 %v561
    %v630 = vunpack.c.l.b16 %v562
    %v631 = vunpack.c.l.b16 %v563
    %v632 = vunpack.c.l.b16 %v564
    %v633 = vunpack.c.l.b16 %v565
    %v634 = vunpack.c.l.b16 %v566
    %v635 = vunpack.c.l.b16 %v567
    %v636 = vunpack.c.l.b16 %v568
    %v637 = vunpack.c.l.b16 %v569
    %v638 = vunpack.c.l.b16 %v570
    %v639 = vunpack.c.l.b16 %v571
    %v640 = vunpack.c.l.b16 %v572
    %v641 = vunpack.c.l.b16 %v573
    %v642 = vunpack.c.l.b16 %v574
    %v643 = vunpack.c.l.b16 %v575
    %v644 = vunpack.c.l.b16 %v576
    %v645 = vunpack.c.l.b16 %v577
    %v646 = vunpack.c.l.b16 %v578
    %v647 = vunpack.c.l.b16 %v579
    %v648 = vunpack.c.l.b16 %v580
    %v649 = vunpack.c.l.b16 %v581
    %v650 = vunpack.c.l.b16 %v582
    %v651 = vunpack.c.l.b16 %v583
    %v652 = vunpack.c.l.b16 %v584
    %v653 = vunpack.c.l.b16 %v585
    %v654 = vunpack.c.l.b16 %v586
    %v655 = vunpack.c.l.b16 %v587
    %v656 = vpack.c.b16 %v625, %v624
    %v657 = vpack.c.b16 %v627, %v626
    %v658 = vpack.c.b16 %v629, %v628
    %v659 = vpack.c.b16 %v631, %v630
    %v660 = vpack.c.b16 %v633, %v632
    %v661 = vpack.c.b16 %v635, %v634
    %v662 = vpack.c.b16 %v637, %v636
    %v663 = vpack.c.b16 %v639, %v638
    %v664 = vpack.c.b16 %v641, %v640
    %v665 = vpack.c.b16 %v643, %v642
    %v666 = vpack.c.b16 %v645, %v644
    %v667 = vpack.c.b16 %v647, %v646
    %v668 = vpack.c.b16 %v649, %v648
    %v669 = vpack.c.b16 %v651, %v650
    %v670 = vpack.c.b16 %v653, %v652
    %v671 = vpack.c.b16 %v655, %v654
    %688 = vmatpush.bf16.msra.mxu0 %v663
    %689 = vmatpush.bf16.msra.mxu0 %v662
    %690 = vmatpush.bf16.msra.mxu0 %v661
    %691 = vmatpush.bf16.msra.mxu0 %v660
    %692 = vmatpush.bf16.msra.mxu0 %v659
    %693 = vmatpush.bf16.msra.mxu0 %v658
    %694 = vmatpush.bf16.msra.mxu0 %v657
    %695 = vmatpush.bf16.msra.mxu0 %v656
    %696 = vmatmul.bf16.gmra.mxu0 %v548
    %v697 = vpop.f32.mrf.mxu0
    %v698 = vadd.f32 %v590, %v697
    %v699 = vpop.f32.mrf.mxu0
    %v700 = vadd.f32 %v590, %v699
    %701 = vmatmul.bf16.gmra.mxu0 %v550
    %v702 = vpop.f32.mrf.mxu0
    %v703 = vadd.f32 %v590, %v702
    %v704 = vpop.f32.mrf.mxu0
    %v705 = vadd.f32 %v590, %v704
    %706 = vmatmul.bf16.gmra.mxu0 %v552
    %v707 = vpop.f32.mrf.mxu0
    %v708 = vadd.f32 %v590, %v707
    %v709 = vpop.f32.mrf.mxu0
    %v710 = vadd.f32 %v590, %v709
    %711 = vmatmul.bf16.gmra.mxu0 %v554
    %v712 = vpop.f32.mrf.mxu0
    %v713 = vadd.f32 %v590, %v712
    %v714 = vpop.f32.mrf.mxu0
    %v715 = vadd.f32 %v590, %v714
    %716 = vdwg.mxu0
    %717 = vmatpush.bf16.msra.mxu0 %v671
    %718 = vmatpush.bf16.msra.mxu0 %v670
    %719 = vmatpush.bf16.msra.mxu0 %v669
    %720 = vmatpush.bf16.msra.mxu0 %v668
    %721 = vmatpush.bf16.msra.mxu0 %v667
    %722 = vmatpush.bf16.msra.mxu0 %v666
    %723 = vmatpush.bf16.msra.mxu0 %v665
    %724 = vmatpush.bf16.msra.mxu0 %v664
    %725 = vmatmul.bf16.gmra.mxu0 %v549
    %v726 = vpop.f32.mrf.mxu0
    %v727 = vadd.f32 %v698, %v726
    %v728 = vpop.f32.mrf.mxu0
    %v729 = vadd.f32 %v700, %v728
    %730 = vmatmul.bf16.gmra.mxu0 %v551
    %v731 = vpop.f32.mrf.mxu0
    %v732 = vadd.f32 %v703, %v731
    %v733 = vpop.f32.mrf.mxu0
    %v734 = vadd.f32 %v705, %v733
    %735 = vmatmul.bf16.gmra.mxu0 %v553
    %v736 = vpop.f32.mrf.mxu0
    %v737 = vadd.f32 %v708, %v736
    %v738 = vpop.f32.mrf.mxu0
    %v739 = vadd.f32 %v710, %v738
    %740 = vmatmul.bf16.gmra.mxu0 %v555
    %v741 = vpop.f32.mrf.mxu0
    %v742 = vadd.f32 %v713, %v741
    %v743 = vpop.f32.mrf.mxu0
    %v744 = vadd.f32 %v715, %v743
    %745 = vdwg.mxu0
    %v746 = vld [vmem:[%s7] sm:$0x1]
    %v748 = vperm.slane %v746, 0
    %v750 = vmax.f32 %v727, %v748
    %v751 = vmax.f32 %v729, %v748
    %v752 = vmax.f32 %v732, %v748
    %v753 = vmax.f32 %v734, %v748
    %v754 = vmax.f32 %v737, %v748
    %v755 = vmax.f32 %v739, %v748
    %v756 = vmax.f32 %v742, %v748
    %v757 = vmax.f32 %v744, %v748
    %v758 = vld [vmem:[%s8] sm:$0x1]
    %v760 = vperm.slane %v758, 0
    %v762 = vmin.f32 %v750, %v760
    %v763 = vmin.f32 %v751, %v760
    %v764 = vmin.f32 %v752, %v760
    %v765 = vmin.f32 %v753, %v760
    %v766 = vmin.f32 %v754, %v760
    %v767 = vmin.f32 %v755, %v760
    %v768 = vmin.f32 %v756, %v760
    %v769 = vmin.f32 %v757, %v760
    %770 = vst [vmem:[%s9] sm:$0xff] %v762
    %771 = vst [vmem:[%s9 + $0x8] sm:$0xff] %v763
    %772 = vst [vmem:[%s9 + $0x10] sm:$0xff] %v764
    %773 = vst [vmem:[%s9 + $0x18] sm:$0xff] %v765
    %774 = vst [vmem:[%s9 + $0x20] sm:$0xff] %v766
    %775 = vst [vmem:[%s9 + $0x28] sm:$0xff] %v767
    %776 = vst [vmem:[%s9 + $0x30] sm:$0xff] %v768
    %777 = vst [vmem:[%s9 + $0x38] sm:$0xff] %v769
    // Predicated region
    $region46: #{actor_forward.1} parent=1 // pred_check
      _
    $region47: #{actor_forward.1} parent=1 // pred_check_branch
      %779 = sbr.rel (0) target = $region49
    $region48: #{actor_forward.1} parent=1 // pred_region
      _
    $region49: #{actor_forward.1} parent=1 // pred_fallthru
      _
    // Predicated region
    $region50: #{actor_forward.1} parent=1 // pred_check
      _
    $region51: #{actor_forward.1} parent=1 // pred_check_branch
      %781 = sbr.rel (0) target = $region53
    $region52: #{actor_forward.1} parent=1 // pred_region
      _
    $region53: #{actor_forward.1} parent=1 // pred_fallthru
      _
    %782 = vsyncpa [#allocation3], 1
    %783 = vsyncpa [#allocation5], 1

</llo_original>
